<compile_context>
chip_gen: v7x
topology: tpu7x:2x2x1
jax: 0.10.0
libtpu: 0.0.40
codegen_flags: <defaults>
</compile_context>

<pallas_src>
import jax
import jax.numpy as jnp
from jax.experimental import pallas as pl
from jax.experimental.pallas import tpu as pltpu


def _round_up(n: int, m: int) -> int:
    return ((n + m - 1) // m) * m


def _cdiv(a: int, b: int) -> int:
    return -(-a // b)


def _mlp_kernel(x_ref, w1_ref, b1_ref, w2_ref, b2_ref, o_ref):
    # Linear 1: (TB, D_in) @ (D_in, H) on the MXU — bf16 operands, f32 accumulate.
    xb = x_ref[...].astype(jnp.bfloat16)
    h = jnp.dot(xb, w1_ref[...], preferred_element_type=jnp.float32)
    # Bias + ReLU epilogue in f32 on the VPU.
    h = jnp.maximum(h + b1_ref[...], 0.0)
    # Linear 2: (TB, H) @ (H, D_out); keep h in bf16 between the two matmuls.
    y = jnp.dot(h.astype(jnp.bfloat16), w2_ref[...],
                preferred_element_type=jnp.float32)
    o_ref[...] = (y + b2_ref[...]).astype(o_ref.dtype)


def _vmem_capacity_bytes() -> int:
    """Per-core VMEM capacity; conservative 64 MiB (v7x) default if unknown."""
    try:
        info = pltpu.get_tpu_info()
        cap = getattr(info, "vmem_capacity_bytes", None)
        if cap:
            return int(cap)
    except Exception:
        pass
    return 64 * 1024 * 1024


def _vmem_estimate_bytes(tile_b: int, d_in: int, h: int, d_out: int) -> int:
    """Conservative VMEM footprint (counts params double-buffered so both the
    Buffered(1) path and the fallback path are guaranteed to fit)."""
    hl = _round_up(h, 128)
    dil = _round_up(d_in, 128)
    dol = _round_up(d_out, 128)
    params = 2 * (2 * _round_up(d_in, 16) * hl      # w1 (bf16)
                  + 2 * _round_up(h, 16) * dol      # w2 (bf16)
                  + 4 * 8 * hl + 4 * 8 * dol)       # biases (f32, 8-sublane tiles)
    io = 2 * 4 * tile_b * dil + 2 * 4 * tile_b * dol   # x / out tiles, 2x buffered
    inter = tile_b * (4 * hl + 2 * hl + 2 * dil)       # h(f32) + h(bf16) + x(bf16)
    return params + io + inter


def my_sequential_forward(x, w1, b1, w2, b2, *, max_tile_b: int | None = None):
    """Fused Linear -> ReLU -> Linear (MySequential forward).

    x:  (B, D_in) f32;  w1: (H, D_in);  b1: (H,);  w2: (D_out, H);  b2: (D_out,)
    returns (B, D_out) f32.
    """
    B, D_in = x.shape
    H = w1.shape[0]
    D_out = w2.shape[0]

    vmem_cap = _vmem_capacity_bytes()
    usable_vmem = int(vmem_cap * 0.85)   # headroom for Mosaic internal scratch

    if max_tile_b is None:
        # Bigger batch tiles on 128 MiB parts (v5e/v6e); 512 rows on 64 MiB v7x.
        max_tile_b = 1024 if vmem_cap >= 96 * 1024 * 1024 else 512

    # ---- batch tiling: minimize padding; >=2 grid steps for moderate batches
    # so the "parallel" axis actually feeds both TensorCores on v7x.
    B_aligned = _round_up(B, 8)
    num_tiles = _cdiv(B_aligned, max_tile_b)
    if B_aligned >= 64:
        num_tiles = max(num_tiles, 2)
    tile_b = _round_up(_cdiv(B_aligned, num_tiles), 8)
    # Shrink the tile (more grid steps) if the estimate doesn't fit VMEM.
    while tile_b > 8 and _vmem_estimate_bytes(tile_b, D_in, H, D_out) > usable_vmem:
        num_tiles *= 2
        tile_b = _round_up(_cdiv(B_aligned, num_tiles), 8)
    num_tiles = _cdiv(B_aligned, tile_b)
    B_p = num_tiles * tile_b

    # ---- one-time parameter prep (tiny): transpose to (in, out) layout + bf16 cast.
    w1_t = w1.T.astype(jnp.bfloat16)                 # (D_in, H)
    w2_t = w2.T.astype(jnp.bfloat16)                 # (H, D_out)
    b1_2d = b1.reshape(1, H).astype(jnp.float32)
    b2_2d = b2.reshape(1, D_out).astype(jnp.float32)

    # Activations go in untouched unless the batch needs sublane padding.
    x_in = x if B_p == B else jnp.pad(x, ((0, B_p - B), (0, 0)))

    vmem_limit = min(
        max(32 * 1024 * 1024,
            int(_vmem_estimate_bytes(tile_b, D_in, H, D_out) * 3 // 2)),
        usable_vmem)

    def _run(single_buffer_params: bool):
        pm = {"pipeline_mode": pl.Buffered(1)} if single_buffer_params else {}
        in_specs = [
            # x: batch-tiled, double-buffered by the pipeline.
            pl.BlockSpec((tile_b, D_in), lambda i: (i, 0)),
            # Params: constant block index -> resident in VMEM across the grid.
            pl.BlockSpec((D_in, H), lambda i: (0, 0), **pm),
            pl.BlockSpec((1, H), lambda i: (0, 0), **pm),
            pl.BlockSpec((H, D_out), lambda i: (0, 0), **pm),
            pl.BlockSpec((1, D_out), lambda i: (0, 0), **pm),
        ]
        return pl.pallas_call(
            _mlp_kernel,
            out_shape=jax.ShapeDtypeStruct((B_p, D_out), x.dtype),
            grid=(num_tiles,),
            in_specs=in_specs,
            out_specs=pl.BlockSpec((tile_b, D_out), lambda i: (i, 0)),
            compiler_params=pltpu.CompilerParams(
                dimension_semantics=("parallel",),
                vmem_limit_bytes=vmem_limit,
            ),
        )(x_in, w1_t, b1_2d, w2_t, b2_2d)

    try:
        out = _run(single_buffer_params=True)
    except Exception:
        # pl.Buffered(1) not accepted by this jax build -> default double-buffering.
        out = _run(single_buffer_params=False)

    return out if B_p == B else out[:B]


def _reference_f32(x, w1, b1, w2, b2):
    h = jnp.maximum(x @ w1.T + b1, 0.0)
    return h @ w2.T + b2


def _reference_bf16(x, w1, b1, w2, b2):
    # Mirror the kernel's quantization: bf16 matmul operands, f32 accumulation,
    # f32 bias/ReLU epilogue.
    w1b = w1.astype(jnp.bfloat16)
    w2b = w2.astype(jnp.bfloat16)
    h = jnp.dot(x.astype(jnp.bfloat16), w1b.T, preferred_element_type=jnp.float32)
    h = jnp.maximum(h + b1, 0.0)
    y = jnp.dot(h.astype(jnp.bfloat16), w2b.T, preferred_element_type=jnp.float32)
    return y + b2


if __name__ == "__main__":
    # Small shapes consistent with MySequential(Linear, ReLU, Linear).
    B, D_in, H, D_out = 8, 64, 32, 16

    key = jax.random.PRNGKey(0)
    kx, kw1, kb1, kw2, kb2 = jax.random.split(key, 5)

    x = jax.random.normal(kx, (B, D_in), dtype=jnp.float32)
    # Deterministic parameter init (uniform, PyTorch-Linear-style scaling).
    w1 = jax.random.uniform(kw1, (H, D_in), jnp.float32, -1.0, 1.0) / jnp.sqrt(D_in)
    b1 = jax.random.uniform(kb1, (H,), jnp.float32, -1.0, 1.0) / jnp.sqrt(D_in)
    w2 = jax.random.uniform(kw2, (D_out, H), jnp.float32, -1.0, 1.0) / jnp.sqrt(H)
    b2 = jax.random.uniform(kb2, (D_out,), jnp.float32, -1.0, 1.0) / jnp.sqrt(H)

    out = jax.block_until_ready(my_sequential_forward(x, w1, b1, w2, b2))
    assert out.shape == (B, D_out)

    # Strict check against a reference with matched bf16 operand quantization.
    ref_q = _reference_bf16(x, w1, b1, w2, b2)
    assert jnp.allclose(out, ref_q, atol=1e-2, rtol=1e-2), "mismatch vs bf16 reference"

    # Loose sanity check against the pure-f32 reference (bf16 quantization noise).
    ref_f32 = _reference_f32(x, w1, b1, w2, b2)
    assert jnp.allclose(out, ref_f32, atol=1e-1, rtol=1e-1), "mismatch vs f32 reference"

    print("KERNEL_OK")
</pallas_src>

<mosaic_0001>
module attributes {stable_mosaic.version = 11 : i64} {
  func.func @_mlp_kernel(%arg0: i32, %arg1: memref<8x64xf32, #tpu.memory_space<vmem>>, %arg2: memref<64x32xbf16, #tpu.memory_space<vmem>>, %arg3: memref<1x32xf32, #tpu.memory_space<vmem>>, %arg4: memref<32x16xbf16, #tpu.memory_space<vmem>>, %arg5: memref<1x16xf32, #tpu.memory_space<vmem>>, %arg6: memref<8x16xf32, #tpu.memory_space<vmem>>) attributes {dimension_semantics = [#tpu.dimension_semantics<parallel>], iteration_bounds = array<i64: 1>, scalar_prefetch = 0 : i64, scratch_operands = 0 : i64, tpu.core_type = #tpu.core_type<tc>, window_params = [{transform_indices = @transform_0, window_bounds = array<i64: 8, 64>}, {pipeline_mode = #tpu.pipeline_mode<synchronous>, transform_indices = @transform_1, window_bounds = array<i64: 64, 32>}, {pipeline_mode = #tpu.pipeline_mode<synchronous>, transform_indices = @transform_2, window_bounds = array<i64: 1, 32>}, {pipeline_mode = #tpu.pipeline_mode<synchronous>, transform_indices = @transform_3, window_bounds = array<i64: 32, 16>}, {pipeline_mode = #tpu.pipeline_mode<synchronous>, transform_indices = @transform_4, window_bounds = array<i64: 1, 16>}, {transform_indices = @transform_5, window_bounds = array<i64: 8, 16>}]} {
    %c0 = arith.constant 0 : index
    %c0_0 = arith.constant 0 : index
    %0 = vector.load %arg1[%c0, %c0_0] : memref<8x64xf32, #tpu.memory_space<vmem>>, vector<8x64xf32>
    %1 = arith.truncf %0 : vector<8x64xf32> to vector<8x64xbf16>
    %c0_1 = arith.constant 0 : index
    %c0_2 = arith.constant 0 : index
    %2 = vector.load %arg2[%c0_1, %c0_2] : memref<64x32xbf16, #tpu.memory_space<vmem>>, vector<64x32xbf16>
    %cst = arith.constant dense<0.000000e+00> : vector<8x32xf32>
    %3 = tpu.matmul %1, %2, %cst {dimension_numbers = #tpu.dot_dimension_numbers<[1], [0], [0], [1], [0, 0, 1, 1], [], []>} : vector<8x64xbf16>, vector<64x32xbf16>, vector<8x32xf32> -> vector<8x32xf32>
    %c0_3 = arith.constant 0 : index
    %c0_4 = arith.constant 0 : index
    %4 = vector.load %arg3[%c0_3, %c0_4] : memref<1x32xf32, #tpu.memory_space<vmem>>, vector<1x32xf32>
    %5 = vector.broadcast %4 : vector<1x32xf32> to vector<8x32xf32>
    %6 = arith.addf %3, %5 : vector<8x32xf32>
    %cst_5 = arith.constant 0.000000e+00 : f32
    %7 = vector.broadcast %cst_5 : f32 to vector<8x32xf32>
    %8 = arith.maximumf %6, %7 : vector<8x32xf32>
    %9 = arith.truncf %8 : vector<8x32xf32> to vector<8x32xbf16>
    %c0_6 = arith.constant 0 : index
    %c0_7 = arith.constant 0 : index
    %10 = vector.load %arg4[%c0_6, %c0_7] : memref<32x16xbf16, #tpu.memory_space<vmem>>, vector<32x16xbf16>
    %cst_8 = arith.constant dense<0.000000e+00> : vector<8x16xf32>
    %11 = tpu.matmul %9, %10, %cst_8 {dimension_numbers = #tpu.dot_dimension_numbers<[1], [0], [0], [1], [0, 0, 1, 1], [], []>} : vector<8x32xbf16>, vector<32x16xbf16>, vector<8x16xf32> -> vector<8x16xf32>
    %c0_9 = arith.constant 0 : index
    %c0_10 = arith.constant 0 : index
    %12 = vector.load %arg5[%c0_9, %c0_10] : memref<1x16xf32, #tpu.memory_space<vmem>>, vector<1x16xf32>
    %13 = vector.broadcast %12 : vector<1x16xf32> to vector<8x16xf32>
    %14 = arith.addf %11, %13 : vector<8x16xf32>
    %c0_11 = arith.constant 0 : index
    %c0_12 = arith.constant 0 : index
    %15 = vector.load %arg6[%c0_11, %c0_12] : memref<8x16xf32, #tpu.memory_space<vmem>>, vector<8x16xf32>
    tpu.vector_store %arg6[%c0_11, %c0_12], %14 {strides = array<i32>} : memref<8x16xf32, #tpu.memory_space<vmem>>, vector<8x16xf32>,
    return
  }
  func.func @transform_0(%arg0: i32) -> (i32, i32) {
    %c0_i32 = arith.constant 0 : i32
    %c0_i32_0 = arith.constant 0 : i32
    return %arg0, %c0_i32 : i32, i32
  }
  func.func @transform_1(%arg0: i32) -> (i32, i32) {
    %c0_i32 = arith.constant 0 : i32
    %c0_i32_0 = arith.constant 0 : i32
    %c0_i32_1 = arith.constant 0 : i32
    return %c0_i32, %c0_i32_0 : i32, i32
  }
  func.func @transform_2(%arg0: i32) -> (i32, i32) {
    %c0_i32 = arith.constant 0 : i32
    %c0_i32_0 = arith.constant 0 : i32
    %c0_i32_1 = arith.constant 0 : i32
    return %c0_i32, %c0_i32_0 : i32, i32
  }
  func.func @transform_3(%arg0: i32) -> (i32, i32) {
    %c0_i32 = arith.constant 0 : i32
    %c0_i32_0 = arith.constant 0 : i32
    %c0_i32_1 = arith.constant 0 : i32
    return %c0_i32, %c0_i32_0 : i32, i32
  }
  func.func @transform_4(%arg0: i32) -> (i32, i32) {
    %c0_i32 = arith.constant 0 : i32
    %c0_i32_0 = arith.constant 0 : i32
    %c0_i32_1 = arith.constant 0 : i32
    return %c0_i32, %c0_i32_0 : i32, i32
  }
  func.func @transform_5(%arg0: i32) -> (i32, i32) {
    %c0_i32 = arith.constant 0 : i32
    %c0_i32_0 = arith.constant 0 : i32
    return %arg0, %c0_i32 : i32, i32
  }
}

module attributes {stable_mosaic.version = 11 : i64} {
  func.func @_mlp_kernel(%arg0: i32, %arg1: memref<8x64xf32, #tpu.memory_space<vmem>>, %arg2: memref<64x32xbf16, #tpu.memory_space<vmem>>, %arg3: memref<1x32xf32, #tpu.memory_space<vmem>>, %arg4: memref<32x16xbf16, #tpu.memory_space<vmem>>, %arg5: memref<1x16xf32, #tpu.memory_space<vmem>>, %arg6: memref<8x16xf32, #tpu.memory_space<vmem>>) attributes {dimension_semantics = [#tpu.dimension_semantics<parallel>], iteration_bounds = array<i64: 1>, scalar_prefetch = 0 : i64, scratch_operands = 0 : i64, tpu.core_type = #tpu.core_type<tc>, window_params = [{transform_indices = @transform_0, window_bounds = array<i64: 8, 64>}, {pipeline_mode = #tpu.pipeline_mode<synchronous>, transform_indices = @transform_1, window_bounds = array<i64: 64, 32>}, {pipeline_mode = #tpu.pipeline_mode<synchronous>, transform_indices = @transform_2, window_bounds = array<i64: 1, 32>}, {pipeline_mode = #tpu.pipeline_mode<synchronous>, transform_indices = @transform_3, window_bounds = array<i64: 32, 16>}, {pipeline_mode = #tpu.pipeline_mode<synchronous>, transform_indices = @transform_4, window_bounds = array<i64: 1, 16>}, {transform_indices = @transform_5, window_bounds = array<i64: 8, 16>}]} {
    %c0 = arith.constant 0 : index
    %c0_0 = arith.constant 0 : index
    %0 = vector.load %arg1[%c0, %c0_0] : memref<8x64xf32, #tpu.memory_space<vmem>>, vector<8x64xf32>
    %1 = arith.truncf %0 : vector<8x64xf32> to vector<8x64xbf16>
    %c0_1 = arith.constant 0 : index
    %c0_2 = arith.constant 0 : index
    %2 = vector.load %arg2[%c0_1, %c0_2] : memref<64x32xbf16, #tpu.memory_space<vmem>>, vector<64x32xbf16>
    %cst = arith.constant dense<0.000000e+00> : vector<8x32xf32>
    %3 = tpu.matmul %1, %2, %cst {dimension_numbers = #tpu.dot_dimension_numbers<[1], [0], [0], [1], [0, 0, 1, 1], [], []>} : vector<8x64xbf16>, vector<64x32xbf16>, vector<8x32xf32> -> vector<8x32xf32>
    %c0_3 = arith.constant 0 : index
    %c0_4 = arith.constant 0 : index
    %4 = vector.load %arg3[%c0_3, %c0_4] : memref<1x32xf32, #tpu.memory_space<vmem>>, vector<1x32xf32>
    %5 = vector.broadcast %4 : vector<1x32xf32> to vector<8x32xf32>
    %6 = arith.addf %3, %5 : vector<8x32xf32>
    %cst_5 = arith.constant 0.000000e+00 : f32
    %7 = vector.broadcast %cst_5 : f32 to vector<8x32xf32>
    %8 = arith.maximumf %6, %7 : vector<8x32xf32>
    %9 = arith.truncf %8 : vector<8x32xf32> to vector<8x32xbf16>
    %c0_6 = arith.constant 0 : index
    %c0_7 = arith.constant 0 : index
    %10 = vector.load %arg4[%c0_6, %c0_7] : memref<32x16xbf16, #tpu.memory_space<vmem>>, vector<32x16xbf16>
    %cst_8 = arith.constant dense<0.000000e+00> : vector<8x16xf32>
    %11 = tpu.matmul %9, %10, %cst_8 {dimension_numbers = #tpu.dot_dimension_numbers<[1], [0], [0], [1], [0, 0, 1, 1], [], []>} : vector<8x32xbf16>, vector<32x16xbf16>, vector<8x16xf32> -> vector<8x16xf32>
    %c0_9 = arith.constant 0 : index
    %c0_10 = arith.constant 0 : index
    %12 = vector.load %arg5[%c0_9, %c0_10] : memref<1x16xf32, #tpu.memory_space<vmem>>, vector<1x16xf32>
    %13 = vector.broadcast %12 : vector<1x16xf32> to vector<8x16xf32>
    %14 = arith.addf %11, %13 : vector<8x16xf32>
    %c0_11 = arith.constant 0 : index
    %c0_12 = arith.constant 0 : index
    %15 = vector.load %arg6[%c0_11, %c0_12] : memref<8x16xf32, #tpu.memory_space<vmem>>, vector<8x16xf32>
    tpu.vector_store %arg6[%c0_11, %c0_12], %14 {strides = array<i32>} : memref<8x16xf32, #tpu.memory_space<vmem>>, vector<8x16xf32>,
    return
  }
  func.func @transform_0(%arg0: i32) -> (i32, i32) {
    %c0_i32 = arith.constant 0 : i32
    %c0_i32_0 = arith.constant 0 : i32
    return %arg0, %c0_i32 : i32, i32
  }
  func.func @transform_1(%arg0: i32) -> (i32, i32) {
    %c0_i32 = arith.constant 0 : i32
    %c0_i32_0 = arith.constant 0 : i32
    %c0_i32_1 = arith.constant 0 : i32
    return %c0_i32, %c0_i32_0 : i32, i32
  }
  func.func @transform_2(%arg0: i32) -> (i32, i32) {
    %c0_i32 = arith.constant 0 : i32
    %c0_i32_0 = arith.constant 0 : i32
    %c0_i32_1 = arith.constant 0 : i32
    return %c0_i32, %c0_i32_0 : i32, i32
  }
  func.func @transform_3(%arg0: i32) -> (i32, i32) {
    %c0_i32 = arith.constant 0 : i32
    %c0_i32_0 = arith.constant 0 : i32
    %c0_i32_1 = arith.constant 0 : i32
    return %c0_i32, %c0_i32_0 : i32, i32
  }
  func.func @transform_4(%arg0: i32) -> (i32, i32) {
    %c0_i32 = arith.constant 0 : i32
    %c0_i32_0 = arith.constant 0 : i32
    %c0_i32_1 = arith.constant 0 : i32
    return %c0_i32, %c0_i32_0 : i32, i32
  }
  func.func @transform_5(%arg0: i32) -> (i32, i32) {
    %c0_i32 = arith.constant 0 : i32
    %c0_i32_0 = arith.constant 0 : i32
    return %arg0, %c0_i32 : i32, i32
  }
}

</mosaic_0001>

<llo_original>
// kernel: tpu_custom_call.1
$region0: #{tpu_custom_call.1}
  #allocation0 [shape = 'u32[]', space=smem, size = 0x4, offset = 0x4, fixed_abs, tag = 'smem constant byte address 0x4 - core index']
  #allocation1 [shape = 'u32[144,128]{1,0:T(1,128)}', space=vmem, size = 0x12000, scoped, tag = 'internal scratch']
  %s0 = inlined_call_operand.vmem [shape: f32[8,64], index: 0, kind: input, shape index: {}]
  %s1 = inlined_call_operand.vmem [shape: bf16[64,32], index: 1, kind: input, shape index: {}]
  %s2 = inlined_call_operand.vmem [shape: f32[1,32], index: 2, kind: input, shape index: {}]
  %s3 = inlined_call_operand.vmem [shape: bf16[32,16], index: 3, kind: input, shape index: {}]
  %s4 = inlined_call_operand.vmem [shape: f32[1,16], index: 4, kind: input, shape index: {}]
  %s5 = inlined_call_operand.hbm [shape: f32[8,16], index: 5, kind: output, shape index: {}]
  %s6 = sld [smem:[#allocation0]]
  $region30: #{tpu_custom_call.1} parent=0
    _
  %s8 = ssub.s32 1, %s6
  %s9 = scalar_select 0, %s8, %s6
  $region1: #{tpu_custom_call.1} parent=0
    #allocation2 [shape = 'u8[4096]{0}', space=vmem, size = 0x1000, scoped, tag = 'output window, operand 0, single buffered']
    #allocation3 [shape = 's32[1]{0}', space=sflag, size = 0x4, scoped, tag = 'scoped memory for tpu_custom_call.1']
    %10 = vsyncpa [#allocation3], 0
    // Predicated region
    $region2: #{tpu_custom_call.1} parent=1 // pred_check
      _
    $region3: #{tpu_custom_call.1} parent=1 // pred_check_branch
      %12 = sbr.rel (0) target = $region5
    $region4: #{tpu_custom_call.1} parent=1 // pred_region
      _
    $region5: #{tpu_custom_call.1} parent=1 // pred_fallthru
      _
    // Predicated region
    $region6: #{tpu_custom_call.1} parent=1 // pred_check
      _
    $region7: #{tpu_custom_call.1} parent=1 // pred_check_branch
      %14 = sbr.rel (0) target = $region9
    $region8: #{tpu_custom_call.1} parent=1 // pred_region
      _
    $region9: #{tpu_custom_call.1} parent=1 // pred_fallthru
      _
    // Predicated region
    $region10: #{tpu_custom_call.1} parent=1 // pred_check
      _
    $region11: #{tpu_custom_call.1} parent=1 // pred_check_branch
      %16 = sbr.rel (0) target = $region13
    $region12: #{tpu_custom_call.1} parent=1 // pred_region
      _
    $region13: #{tpu_custom_call.1} parent=1 // pred_fallthru
      _
    // Predicated region
    $region14: #{tpu_custom_call.1} parent=1 // pred_check
      _
    $region15: #{tpu_custom_call.1} parent=1 // pred_check_branch
      %18 = sbr.rel (0) target = $region17
    $region16: #{tpu_custom_call.1} parent=1 // pred_region
      _
    $region17: #{tpu_custom_call.1} parent=1 // pred_fallthru
      _
    // Predicated region
    $region18: #{tpu_custom_call.1} parent=1 // pred_check
      _
    $region19: #{tpu_custom_call.1} parent=1 // pred_check_branch
      %20 = sbr.rel (0) target = $region21
    $region20: #{tpu_custom_call.1} parent=1 // pred_region
      _
    $region21: #{tpu_custom_call.1} parent=1 // pred_fallthru
      _
    %v22 = vld [vmem:[%s0] sm:$0xff]
    %v23 = vpack.c.bf16 %v22, %v22
    %v24 = vld [vmem:[%s1] sm:$0xf]
    %v25 = vld [vmem:[%s1 + $0x4] sm:$0xf]
    %v26 = vld [vmem:[%s1 + $0x8] sm:$0xf]
    %v27 = vld [vmem:[%s1 + $0xc] sm:$0xf]
    %v28 = vld [vmem:[%s1 + $0x10] sm:$0xf]
    %v29 = vld [vmem:[%s1 + $0x14] sm:$0xf]
    %v30 = vld [vmem:[%s1 + $0x18] sm:$0xf]
    %v31 = vld [vmem:[%s1 + $0x1c] sm:$0xf]
    %v32 = vld [vmem:[%s2] sm:$0x1]
    %v34 = vlaneseq
    %v35 = vshrl.u32 %v34, 7
    %v36 = vsub.s32 0, %v35
    %v37 = vrot.slane %v32, %v36
    %v47 = vunpack.c.l.b16 %v24
    %v48 = vunpack.c.l.b16 %v25
    %v49 = vunpack.c.l.b16 %v26
    %v50 = vunpack.c.l.b16 %v27
    %v51 = vunpack.c.l.b16 %v28
    %v52 = vunpack.c.l.b16 %v29
    %v53 = vunpack.c.l.b16 %v30
    %v54 = vunpack.c.l.b16 %v31
    %v55 = vpack.c.b16 %v48, %v47
    %v56 = vpack.c.b16 %v50, %v49
    %v57 = vpack.c.b16 %v52, %v51
    %v58 = vpack.c.b16 %v54, %v53
    %vm63 = vcmask 523264
    %v65 = vsel %vm63, %v23, 0
    %67 = vmatprep.subr.bf16.mxu0 0
    %68 = vmatpush1.bf16.msra.mxu0 %v55
    %69 = vmatprep.subr.bf16.mxu0 0
    %70 = vmatpush1.bf16.msra.mxu0 %v56
    %71 = vmatprep.subr.bf16.mxu0 0
    %72 = vmatpush1.bf16.msra.mxu0 %v57
    %73 = vmatprep.subr.bf16.mxu0 0
    %74 = vmatpush1.bf16.msra.mxu0 %v58
    %75 = vmatprep.subr.bf16.mxu0 0
    %76 = vmatpush1.bf16.msra.mxu0 0
    %77 = vmatprep.subr.bf16.mxu0 0
    %78 = vmatpush1.bf16.msra.mxu0 0
    %79 = vmatprep.subr.bf16.mxu0 0
    %80 = vmatpush1.bf16.msra.mxu0 0
    %81 = vmatprep.subr.bf16.mxu0 0
    %82 = vmatpush1.bf16.msra.mxu0 0
    %83 = vmatprep.subr.bf16.mxu0 0
    %84 = vmatpush1.bf16.msra.mxu0 0
    %85 = vmatprep.subr.bf16.mxu0 0
    %86 = vmatpush1.bf16.msra.mxu0 0
    %87 = vmatprep.subr.bf16.mxu0 0
    %88 = vmatpush1.bf16.msra.mxu0 0
    %89 = vmatprep.subr.bf16.mxu0 0
    %90 = vmatpush1.bf16.msra.mxu0 0
    %91 = vmatprep.subr.bf16.mxu0 0
    %92 = vmatpush1.bf16.msra.mxu0 0
    %93 = vmatprep.subr.bf16.mxu0 0
    %94 = vmatpush1.bf16.msra.mxu0 0
    %95 = vmatprep.subr.bf16.mxu0 0
    %96 = vmatpush1.bf16.msra.mxu0 0
    %97 = vmatprep.subr.bf16.mxu0 0
    %98 = vmatpush1.bf16.msra.mxu0 0
    %99 = vmatprep.mubr.bf16.mxu0 0
    %100 = vmatmul.mubr.bf16.gmra.mrb[0].mxu0 %v65
    %v101 = vpop.f32.mrb[0].mxu0
    %v102 = vadd.f32 %v37, %v101
    %v103 = vpop.f32.mrb[0].mxu0
    %v104 = vpop.f32.mrb[0].mxu0
    %v105 = vpop.f32.mrb[0].mxu0
    %106 = vdwg.mxu0
    %v107 = vmax.f32 %v102, 0.0
    %v108 = vpack.c.bf16 %v107, %v107
    %v109 = vld [vmem:[%s3] sm:$0xf]
    %v110 = vld [vmem:[%s3 + $0x4] sm:$0xf]
    %v111 = vld [vmem:[%s3 + $0x8] sm:$0xf]
    %v112 = vld [vmem:[%s3 + $0xc] sm:$0xf]
    %v113 = vld [vmem:[%s4] sm:$0x1]
    %v115 = vlaneseq
    %v116 = vshrl.u32 %v115, 7
    %v117 = vsub.s32 0, %v116
    %v118 = vrot.slane %v113, %v117
    %v124 = vunpack.c.l.b16 %v109
    %v125 = vunpack.c.l.b16 %v110
    %v126 = vunpack.c.l.b16 %v111
    %v127 = vunpack.c.l.b16 %v112
    %v128 = vpack.c.b16 %v125, %v124
    %v129 = vpack.c.b16 %v127, %v126
    %vm132 = vcmask 261120
    %v134 = vsel %vm132, %v108, 0
    %136 = vmatprep.subr.bf16.mxu0 0
    %137 = vmatpush1.bf16.msra.mxu0 %v128
    %138 = vmatprep.subr.bf16.mxu0 0
    %139 = vmatpush1.bf16.msra.mxu0 %v129
    %140 = vmatprep.subr.bf16.mxu0 0
    %141 = vmatpush1.bf16.msra.mxu0 0
    %142 = vmatprep.subr.bf16.mxu0 0
    %143 = vmatpush1.bf16.msra.mxu0 0
    %144 = vmatprep.subr.bf16.mxu0 0
    %145 = vmatpush1.bf16.msra.mxu0 0
    %146 = vmatprep.subr.bf16.mxu0 0
    %147 = vmatpush1.bf16.msra.mxu0 0
    %148 = vmatprep.subr.bf16.mxu0 0
    %149 = vmatpush1.bf16.msra.mxu0 0
    %150 = vmatprep.subr.bf16.mxu0 0
    %151 = vmatpush1.bf16.msra.mxu0 0
    %152 = vmatprep.subr.bf16.mxu0 0
    %153 = vmatpush1.bf16.msra.mxu0 0
    %154 = vmatprep.subr.bf16.mxu0 0
    %155 = vmatpush1.bf16.msra.mxu0 0
    %156 = vmatprep.subr.bf16.mxu0 0
    %157 = vmatpush1.bf16.msra.mxu0 0
    %158 = vmatprep.subr.bf16.mxu0 0
    %159 = vmatpush1.bf16.msra.mxu0 0
    %160 = vmatprep.subr.bf16.mxu0 0
    %161 = vmatpush1.bf16.msra.mxu0 0
    %162 = vmatprep.subr.bf16.mxu0 0
    %163 = vmatpush1.bf16.msra.mxu0 0
    %164 = vmatprep.subr.bf16.mxu0 0
    %165 = vmatpush1.bf16.msra.mxu0 0
    %166 = vmatprep.subr.bf16.mxu0 0
    %167 = vmatpush1.bf16.msra.mxu0 0
    %168 = vmatprep.mubr.bf16.mxu0 0
    %169 = vmatmul.mubr.bf16.gmra.mrb[0].mxu0 %v134
    %v170 = vpop.f32.mrb[0].mxu0
    %v171 = vadd.f32 %v118, %v170
    %v172 = vpop.f32.mrb[0].mxu0
    %v173 = vpop.f32.mrb[0].mxu0
    %v174 = vpop.f32.mrb[0].mxu0
    %175 = vdwg.mxu0
    %vm176 = vcmask 130048
    %177 = vst.msk [vmem:[#allocation2] sm:$0xff] %vm176, %v171
    // Predicated region
    $region22: #{tpu_custom_call.1} parent=1 // pred_check
      _
    $region23: #{tpu_custom_call.1} parent=1 // pred_check_branch
      %179 = sbr.rel (0) target = $region25
    $region24: #{tpu_custom_call.1} parent=1 // pred_region
      %s181 = ssub.s32 128, 128
      %182 = vsyncadd [#allocation3], %s181
      %s184 = sshll.u32 [#allocation2], 4
      %s185 = int_to_ptr.vmem [resolvable:$true] %s184
      %187 = dma.vmem_to_hbm [thread:$0]  %s185, 128, %s5, [#allocation3]
    $region25: #{tpu_custom_call.1} parent=1 // pred_fallthru
      _
    // Predicated region
    $region26: #{tpu_custom_call.1} parent=1 // pred_check
      _
    $region27: #{tpu_custom_call.1} parent=1 // pred_check_branch
      %189 = sbr.rel (0) target = $region29
    $region28: #{tpu_custom_call.1} parent=1 // pred_region
      %190 = dma.done [#allocation3], 128
    $region29: #{tpu_custom_call.1} parent=1 // pred_fallthru
      _
    %191 = vsyncpa [#allocation3], 1

// kernel: tpu_custom_call.1
$region0: #{tpu_custom_call.1}
  #allocation0 [shape = 'u32[]', space=smem, size = 0x4, offset = 0x4, fixed_abs, tag = 'smem constant byte address 0x4 - core index']
  #allocation1 [shape = 'u32[144,128]{1,0:T(1,128)}', space=vmem, size = 0x12000, scoped, tag = 'internal scratch']
  %s0 = inlined_call_operand.vmem [shape: f32[8,64], index: 0, kind: input, shape index: {}]
  %s1 = inlined_call_operand.vmem [shape: bf16[64,32], index: 1, kind: input, shape index: {}]
  %s2 = inlined_call_operand.vmem [shape: f32[1,32], index: 2, kind: input, shape index: {}]
  %s3 = inlined_call_operand.vmem [shape: bf16[32,16], index: 3, kind: input, shape index: {}]
  %s4 = inlined_call_operand.vmem [shape: f32[1,16], index: 4, kind: input, shape index: {}]
  %s5 = inlined_call_operand.hbm [shape: f32[8,16], index: 5, kind: output, shape index: {}]
  %s6 = sld [smem:[#allocation0]]
  $region30: #{tpu_custom_call.1} parent=0
    _
  %s8 = ssub.s32 1, %s6
  %s9 = scalar_select 0, %s8, %s6
  $region1: #{tpu_custom_call.1} parent=0
    #allocation2 [shape = 'u8[4096]{0}', space=vmem, size = 0x1000, scoped, tag = 'output window, operand 0, single buffered']
    #allocation3 [shape = 's32[1]{0}', space=sflag, size = 0x4, scoped, tag = 'scoped memory for tpu_custom_call.1']
    %10 = vsyncpa [#allocation3], 0
    // Predicated region
    $region2: #{tpu_custom_call.1} parent=1 // pred_check
      _
    $region3: #{tpu_custom_call.1} parent=1 // pred_check_branch
      %12 = sbr.rel (0) target = $region5
    $region4: #{tpu_custom_call.1} parent=1 // pred_region
      _
    $region5: #{tpu_custom_call.1} parent=1 // pred_fallthru
      _
    // Predicated region
    $region6: #{tpu_custom_call.1} parent=1 // pred_check
      _
    $region7: #{tpu_custom_call.1} parent=1 // pred_check_branch
      %14 = sbr.rel (0) target = $region9
    $region8: #{tpu_custom_call.1} parent=1 // pred_region
      _
    $region9: #{tpu_custom_call.1} parent=1 // pred_fallthru
      _
    // Predicated region
    $region10: #{tpu_custom_call.1} parent=1 // pred_check
      _
    $region11: #{tpu_custom_call.1} parent=1 // pred_check_branch
      %16 = sbr.rel (0) target = $region13
    $region12: #{tpu_custom_call.1} parent=1 // pred_region
      _
    $region13: #{tpu_custom_call.1} parent=1 // pred_fallthru
      _
    // Predicated region
    $region14: #{tpu_custom_call.1} parent=1 // pred_check
      _
    $region15: #{tpu_custom_call.1} parent=1 // pred_check_branch
      %18 = sbr.rel (0) target = $region17
    $region16: #{tpu_custom_call.1} parent=1 // pred_region
      _
    $region17: #{tpu_custom_call.1} parent=1 // pred_fallthru
      _
    // Predicated region
    $region18: #{tpu_custom_call.1} parent=1 // pred_check
      _
    $region19: #{tpu_custom_call.1} parent=1 // pred_check_branch
      %20 = sbr.rel (0) target = $region21
    $region20: #{tpu_custom_call.1} parent=1 // pred_region
      _
    $region21: #{tpu_custom_call.1} parent=1 // pred_fallthru
      _
    %v22 = vld [vmem:[%s0] sm:$0xff]
    %v23 = vpack.c.bf16 %v22, %v22
    %v24 = vld [vmem:[%s1] sm:$0xf]
    %v25 = vld [vmem:[%s1 + $0x4] sm:$0xf]
    %v26 = vld [vmem:[%s1 + $0x8] sm:$0xf]
    %v27 = vld [vmem:[%s1 + $0xc] sm:$0xf]
    %v28 = vld [vmem:[%s1 + $0x10] sm:$0xf]
    %v29 = vld [vmem:[%s1 + $0x14] sm:$0xf]
    %v30 = vld [vmem:[%s1 + $0x18] sm:$0xf]
    %v31 = vld [vmem:[%s1 + $0x1c] sm:$0xf]
    %v32 = vld [vmem:[%s2] sm:$0x1]
    %v34 = vlaneseq
    %v35 = vshrl.u32 %v34, 7
    %v36 = vsub.s32 0, %v35
    %v37 = vrot.slane %v32, %v36
    %v47 = vunpack.c.l.b16 %v24
    %v48 = vunpack.c.l.b16 %v25
    %v49 = vunpack.c.l.b16 %v26
    %v50 = vunpack.c.l.b16 %v27
    %v51 = vunpack.c.l.b16 %v28
    %v52 = vunpack.c.l.b16 %v29
    %v53 = vunpack.c.l.b16 %v30
    %v54 = vunpack.c.l.b16 %v31
    %v55 = vpack.c.b16 %v48, %v47
    %v56 = vpack.c.b16 %v50, %v49
    %v57 = vpack.c.b16 %v52, %v51
    %v58 = vpack.c.b16 %v54, %v53
    %vm63 = vcmask 523264
    %v65 = vsel %vm63, %v23, 0
    %67 = vmatprep.subr.bf16.mxu0 0
    %68 = vmatpush1.bf16.msra.mxu0 %v55
    %69 = vmatprep.subr.bf16.mxu0 0
    %70 = vmatpush1.bf16.msra.mxu0 %v56
    %71 = vmatprep.subr.bf16.mxu0 0
    %72 = vmatpush1.bf16.msra.mxu0 %v57
    %73 = vmatprep.subr.bf16.mxu0 0
    %74 = vmatpush1.bf16.msra.mxu0 %v58
    %75 = vmatprep.subr.bf16.mxu0 0
    %76 = vmatpush1.bf16.msra.mxu0 0
    %77 = vmatprep.subr.bf16.mxu0 0
    %78 = vmatpush1.bf16.msra.mxu0 0
    %79 = vmatprep.subr.bf16.mxu0 0
    %80 = vmatpush1.bf16.msra.mxu0 0
    %81 = vmatprep.subr.bf16.mxu0 0
    %82 = vmatpush1.bf16.msra.mxu0 0
    %83 = vmatprep.subr.bf16.mxu0 0
    %84 = vmatpush1.bf16.msra.mxu0 0
    %85 = vmatprep.subr.bf16.mxu0 0
    %86 = vmatpush1.bf16.msra.mxu0 0
    %87 = vmatprep.subr.bf16.mxu0 0
    %88 = vmatpush1.bf16.msra.mxu0 0
    %89 = vmatprep.subr.bf16.mxu0 0
    %90 = vmatpush1.bf16.msra.mxu0 0
    %91 = vmatprep.subr.bf16.mxu0 0
    %92 = vmatpush1.bf16.msra.mxu0 0
    %93 = vmatprep.subr.bf16.mxu0 0
    %94 = vmatpush1.bf16.msra.mxu0 0
    %95 = vmatprep.subr.bf16.mxu0 0
    %96 = vmatpush1.bf16.msra.mxu0 0
    %97 = vmatprep.subr.bf16.mxu0 0
    %98 = vmatpush1.bf16.msra.mxu0 0
    %99 = vmatprep.mubr.bf16.mxu0 0
    %100 = vmatmul.mubr.bf16.gmra.mrb[0].mxu0 %v65
    %v101 = vpop.f32.mrb[0].mxu0
    %v102 = vadd.f32 %v37, %v101
    %v103 = vpop.f32.mrb[0].mxu0
    %v104 = vpop.f32.mrb[0].mxu0
    %v105 = vpop.f32.mrb[0].mxu0
    %106 = vdwg.mxu0
    %v107 = vmax.f32 %v102, 0.0
    %v108 = vpack.c.bf16 %v107, %v107
    %v109 = vld [vmem:[%s3] sm:$0xf]
    %v110 = vld [vmem:[%s3 + $0x4] sm:$0xf]
    %v111 = vld [vmem:[%s3 + $0x8] sm:$0xf]
    %v112 = vld [vmem:[%s3 + $0xc] sm:$0xf]
    %v113 = vld [vmem:[%s4] sm:$0x1]
    %v115 = vlaneseq
    %v116 = vshrl.u32 %v115, 7
    %v117 = vsub.s32 0, %v116
    %v118 = vrot.slane %v113, %v117
    %v124 = vunpack.c.l.b16 %v109
    %v125 = vunpack.c.l.b16 %v110
    %v126 = vunpack.c.l.b16 %v111
    %v127 = vunpack.c.l.b16 %v112
    %v128 = vpack.c.b16 %v125, %v124
    %v129 = vpack.c.b16 %v127, %v126
    %vm132 = vcmask 261120
    %v134 = vsel %vm132, %v108, 0
    %136 = vmatprep.subr.bf16.mxu0 0
    %137 = vmatpush1.bf16.msra.mxu0 %v128
    %138 = vmatprep.subr.bf16.mxu0 0
    %139 = vmatpush1.bf16.msra.mxu0 %v129
    %140 = vmatprep.subr.bf16.mxu0 0
    %141 = vmatpush1.bf16.msra.mxu0 0
    %142 = vmatprep.subr.bf16.mxu0 0
    %143 = vmatpush1.bf16.msra.mxu0 0
    %144 = vmatprep.subr.bf16.mxu0 0
    %145 = vmatpush1.bf16.msra.mxu0 0
    %146 = vmatprep.subr.bf16.mxu0 0
    %147 = vmatpush1.bf16.msra.mxu0 0
    %148 = vmatprep.subr.bf16.mxu0 0
    %149 = vmatpush1.bf16.msra.mxu0 0
    %150 = vmatprep.subr.bf16.mxu0 0
    %151 = vmatpush1.bf16.msra.mxu0 0
    %152 = vmatprep.subr.bf16.mxu0 0
    %153 = vmatpush1.bf16.msra.mxu0 0
    %154 = vmatprep.subr.bf16.mxu0 0
    %155 = vmatpush1.bf16.msra.mxu0 0
    %156 = vmatprep.subr.bf16.mxu0 0
    %157 = vmatpush1.bf16.msra.mxu0 0
    %158 = vmatprep.subr.bf16.mxu0 0
    %159 = vmatpush1.bf16.msra.mxu0 0
    %160 = vmatprep.subr.bf16.mxu0 0
    %161 = vmatpush1.bf16.msra.mxu0 0
    %162 = vmatprep.subr.bf16.mxu0 0
    %163 = vmatpush1.bf16.msra.mxu0 0
    %164 = vmatprep.subr.bf16.mxu0 0
    %165 = vmatpush1.bf16.msra.mxu0 0
    %166 = vmatprep.subr.bf16.mxu0 0
    %167 = vmatpush1.bf16.msra.mxu0 0
    %168 = vmatprep.mubr.bf16.mxu0 0
    %169 = vmatmul.mubr.bf16.gmra.mrb[0].mxu0 %v134
    %v170 = vpop.f32.mrb[0].mxu0
    %v171 = vadd.f32 %v118, %v170
    %v172 = vpop.f32.mrb[0].mxu0
    %v173 = vpop.f32.mrb[0].mxu0
    %v174 = vpop.f32.mrb[0].mxu0
    %175 = vdwg.mxu0
    %vm176 = vcmask 130048
    %177 = vst.msk [vmem:[#allocation2] sm:$0xff] %vm176, %v171
    // Predicated region
    $region22: #{tpu_custom_call.1} parent=1 // pred_check
      _
    $region23: #{tpu_custom_call.1} parent=1 // pred_check_branch
      %179 = sbr.rel (0) target = $region25
    $region24: #{tpu_custom_call.1} parent=1 // pred_region
      %s181 = ssub.s32 128, 128
      %182 = vsyncadd [#allocation3], %s181
      %s184 = sshll.u32 [#allocation2], 4
      %s185 = int_to_ptr.vmem [resolvable:$true] %s184
      %187 = dma.vmem_to_hbm [thread:$0]  %s185, 128, %s5, [#allocation3]
    $region25: #{tpu_custom_call.1} parent=1 // pred_fallthru
      _
    // Predicated region
    $region26: #{tpu_custom_call.1} parent=1 // pred_check
      _
    $region27: #{tpu_custom_call.1} parent=1 // pred_check_branch
      %189 = sbr.rel (0) target = $region29
    $region28: #{tpu_custom_call.1} parent=1 // pred_region
      %190 = dma.done [#allocation3], 128
    $region29: #{tpu_custom_call.1} parent=1 // pred_fallthru
      _
    %191 = vsyncpa [#allocation3], 1

</llo_original>
